<compile_context>
chip_gen: v5e
topology: v5e:2x2
jax: 0.10.0
libtpu: 0.0.40
codegen_flags: <defaults>
</compile_context>

<pallas_src>
import jax
import jax.numpy as jnp
from jax.experimental import pallas as pl
from jax.experimental.pallas import tpu as pltpu

# ---------------- small, deterministic demo shapes ----------------
NUM_NODES = 64          # N
IN_FEATURES = 32        # D_in
OUT_FEATURES = 32       # D_out
NUM_EDGES = 256         # E
LANES = 128             # TPU lane width (feature padding target)


def _round_up(x, m):
    return (x + m - 1) // m * m


def agg_bias_kernel(adj_ref, y_ref, b_ref, out_ref):
    """One destination-row tile:  out = A_tile @ Y + b  (single MXU dot per step).

    adj_ref : (tile_m, N)   bf16  adjacency rows, adj[dest, source] = edge multiplicity
    y_ref   : (N, Dp)       f32   Y = X @ W_pad^T  (linear weight folded in, lane-padded)
    b_ref   : (1, Dp)       f32   lane-padded bias
    out_ref : (tile_m, Dp)  f32   lane-dense (Dp % 128 == 0) -> unmasked vector stores
    """
    adj = adj_ref[...].astype(jnp.float32)   # cheap VPU cast; exact for integer counts
    out_ref[...] = (
        jnp.dot(adj, y_ref[...], preferred_element_type=jnp.float32) + b_ref[...]
    )


def _vmem_budget_bytes(tile_m, n, d_pad):
    """Actual VMEM need (double-buffered tiles) with 2x headroom, capped well below
    v7x's 64 MiB physical VMEM."""
    adj = 2 * tile_m * n * 2          # bf16 adjacency tile, double-buffered
    y = 2 * n * d_pad * 4             # grid-constant Y
    b = 2 * 8 * LANES * 4             # bias (padded to one (8,128) tile)
    out = 2 * tile_m * d_pad * 4      # output tile
    need = adj + y + b + out
    return int(min(max(2 * need, 8 * 1024 * 1024), 32 * 1024 * 1024))


@jax.jit
def trainable_gnn_layer_forward(node_features, edge_index, weight, bias):
    """Pallas forward: Linear(index_add_(0, dest, x[source]))."""
    n, d_in = node_features.shape
    d_out = weight.shape[0]
    d_pad = _round_up(d_out, LANES)

    # --- preprocessing (fused under jit) ---------------------------------------
    # Dense adjacency with edge multiplicities == index_add_ semantics.
    # bf16 represents integer counts <= 256 exactly.
    src, dst = edge_index[0], edge_index[1]
    adj = (
        jnp.zeros((n, n), jnp.float32).at[dst, src].add(1.0).astype(jnp.bfloat16)
    )

    # Fold the linear weight into the features (associativity): Y = X @ W^T,
    # zero-padded to 128 output lanes so the kernel's stores are lane-dense.
    w_pad = jnp.zeros((d_pad, d_in), jnp.float32).at[:d_out, :].set(
        weight.astype(jnp.float32))
    b_pad = jnp.zeros((1, d_pad), jnp.float32).at[0, :d_out].set(
        bias.astype(jnp.float32))
    y = node_features.astype(jnp.float32) @ w_pad.T          # (N, Dp)

    # --- tiling: one block at demo size; 256-row tiles (128 on v5e) at scale ----
    tile_m = n if n <= 256 else 256
    grid = (pl.cdiv(n, tile_m),)

    out_pad = pl.pallas_call(
        agg_bias_kernel,
        out_shape=jax.ShapeDtypeStruct((n, d_pad), jnp.float32),
        grid=grid,
        in_specs=[
            pl.BlockSpec((tile_m, n), lambda i: (i, 0)),     # A row tile (pipelined)
            pl.BlockSpec((n, d_pad), lambda i: (0, 0)),      # Y, grid-constant
            pl.BlockSpec((1, d_pad), lambda i: (0, 0)),      # bias, grid-constant
            # NOTE: at production N mark Y / bias with pipeline_mode=pl.Buffered(1)
            # so grid-constant blocks are not double-buffered (v7x VMEM headroom).
        ],
        out_specs=pl.BlockSpec((tile_m, d_pad), lambda i: (i, 0)),
        compiler_params=pltpu.CompilerParams(
            dimension_semantics=("parallel",),               # shards row tiles on v7x
            vmem_limit_bytes=_vmem_budget_bytes(tile_m, n, d_pad),
        ),
    )(adj, y, b_pad)

    return out_pad[:, :d_out]


# ---------------- pure-JAX reference (mirrors the torch module) ----------------
def gnn_layer_reference(node_features, edge_index, weight, bias):
    src, dst = edge_index[0], edge_index[1]
    neighbor = node_features[src]                                   # gather
    agg = jnp.zeros_like(node_features).at[dst].add(neighbor)       # index_add_
    return agg @ weight.T + bias                                    # nn.Linear


if __name__ == "__main__":
    key = jax.random.PRNGKey(0)
    k_x, k_w, k_b, k_src, k_dst = jax.random.split(key, 5)

    node_features = jax.random.normal(k_x, (NUM_NODES, IN_FEATURES), jnp.float32)

    # nn.Linear default init: U(-1/sqrt(in_features), 1/sqrt(in_features))
    bound = 1.0 / (IN_FEATURES ** 0.5)
    weight = jax.random.uniform(k_w, (OUT_FEATURES, IN_FEATURES), jnp.float32,
                                -bound, bound)
    bias = jax.random.uniform(k_b, (OUT_FEATURES,), jnp.float32, -bound, bound)

    # Deterministic synthetic edge list (repeats -> multiplicities, like index_add_).
    src = jax.random.randint(k_src, (NUM_EDGES,), 0, NUM_NODES)
    dst = jax.random.randint(k_dst, (NUM_EDGES,), 0, NUM_NODES)
    edge_index = jnp.stack([src, dst], axis=0).astype(jnp.int32)    # (2, E)

    out = trainable_gnn_layer_forward(node_features, edge_index, weight, bias)
    out = jax.block_until_ready(out)

    ref = gnn_layer_reference(node_features, edge_index, weight, bias)
    assert out.shape == (NUM_NODES, OUT_FEATURES), out.shape
    assert jnp.allclose(out, ref, atol=1e-4, rtol=1e-4), (
        float(jnp.max(jnp.abs(out - ref))))

    print("KERNEL_OK")
</pallas_src>

<mosaic_0001>
module attributes {stable_mosaic.version = 11 : i64} {
  func.func @agg_bias_kernel(%arg0: i32, %arg1: memref<64x64xbf16, #tpu.memory_space<vmem>>, %arg2: memref<64x128xf32, #tpu.memory_space<vmem>>, %arg3: memref<1x128xf32, #tpu.memory_space<vmem>>, %arg4: memref<64x128xf32, #tpu.memory_space<vmem>>) attributes {dimension_semantics = [#tpu.dimension_semantics<parallel>], iteration_bounds = array<i64: 1>, scalar_prefetch = 0 : i64, scratch_operands = 0 : i64, tpu.core_type = #tpu.core_type<tc>, window_params = [{transform_indices = @transform_0, window_bounds = array<i64: 64, 64>}, {pipeline_mode = #tpu.pipeline_mode<synchronous>, transform_indices = @transform_1, window_bounds = array<i64: 64, 128>}, {pipeline_mode = #tpu.pipeline_mode<synchronous>, transform_indices = @transform_2, window_bounds = array<i64: 1, 128>}, {transform_indices = @transform_3, window_bounds = array<i64: 64, 128>}]} {
    %c0 = arith.constant 0 : index
    %c0_0 = arith.constant 0 : index
    %0 = vector.load %arg1[%c0, %c0_0] : memref<64x64xbf16, #tpu.memory_space<vmem>>, vector<64x64xbf16>
    %1 = arith.extf %0 : vector<64x64xbf16> to vector<64x64xf32>
    %c0_1 = arith.constant 0 : index
    %c0_2 = arith.constant 0 : index
    %2 = vector.load %arg2[%c0_1, %c0_2] : memref<64x128xf32, #tpu.memory_space<vmem>>, vector<64x128xf32>
    %cst = arith.constant dense<0.000000e+00> : vector<64x128xf32>
    %3 = tpu.matmul %1, %2, %cst {dimension_numbers = #tpu.dot_dimension_numbers<[1], [0], [0], [1], [0, 0, 1, 1], [], []>} : vector<64x64xf32>, vector<64x128xf32>, vector<64x128xf32> -> vector<64x128xf32>
    %c0_3 = arith.constant 0 : index
    %c0_4 = arith.constant 0 : index
    %4 = vector.load %arg3[%c0_3, %c0_4] : memref<1x128xf32, #tpu.memory_space<vmem>>, vector<1x128xf32>
    %5 = vector.broadcast %4 : vector<1x128xf32> to vector<64x128xf32>
    %6 = arith.addf %3, %5 : vector<64x128xf32>
    %c0_5 = arith.constant 0 : index
    %c0_6 = arith.constant 0 : index
    %7 = vector.load %arg4[%c0_5, %c0_6] : memref<64x128xf32, #tpu.memory_space<vmem>>, vector<64x128xf32>
    tpu.vector_store %arg4[%c0_5, %c0_6], %6 {strides = array<i32>} : memref<64x128xf32, #tpu.memory_space<vmem>>, vector<64x128xf32>,
    return
  }
  func.func @transform_0(%arg0: i32) -> (i32, i32) {
    %c0_i32 = arith.constant 0 : i32
    %c0_i32_0 = arith.constant 0 : i32
    return %arg0, %c0_i32 : i32, i32
  }
  func.func @transform_1(%arg0: i32) -> (i32, i32) {
    %c0_i32 = arith.constant 0 : i32
    %c0_i32_0 = arith.constant 0 : i32
    %c0_i32_1 = arith.constant 0 : i32
    return %c0_i32, %c0_i32_0 : i32, i32
  }
  func.func @transform_2(%arg0: i32) -> (i32, i32) {
    %c0_i32 = arith.constant 0 : i32
    %c0_i32_0 = arith.constant 0 : i32
    %c0_i32_1 = arith.constant 0 : i32
    return %c0_i32, %c0_i32_0 : i32, i32
  }
  func.func @transform_3(%arg0: i32) -> (i32, i32) {
    %c0_i32 = arith.constant 0 : i32
    %c0_i32_0 = arith.constant 0 : i32
    return %arg0, %c0_i32 : i32, i32
  }
}

</mosaic_0001>

<llo_original>
// kernel: trainable_gnn_layer_forward.1
$region0: #{trainable_gnn_layer_forward.1}
  #allocation0 [shape = 'u32[]', space=smem, size = 0x4, offset = 0x4, fixed_abs, tag = 'smem constant byte address 0x4 - core index']
  #allocation1 [shape = 'u32[72,128]{1,0:T(1,128)}', space=vmem, size = 0x9000, scoped, tag = 'internal scratch']
  %s0 = inlined_call_operand.vmem [shape: bf16[64,64], index: 0, kind: input, shape index: {}]
  %s1 = inlined_call_operand.vmem [shape: f32[64,128], index: 1, kind: input, shape index: {}]
  %s2 = inlined_call_operand.vmem [shape: f32[1,128], index: 2, kind: input, shape index: {}]
  %s3 = inlined_call_operand.vmem [shape: f32[64,128], index: 3, kind: output, shape index: {}]
  %s4 = sld [smem:[#allocation0]]
  $region22: #{trainable_gnn_layer_forward.1} parent=0
    _
  %s6 = ssub.s32 1, %s4
  %s7 = scalar_select 0, %s6, %s4
  // Predicated region
  $region2: #{trainable_gnn_layer_forward.1} parent=0 // pred_check
    _
  $region3: #{trainable_gnn_layer_forward.1} parent=0 // pred_check_branch
    %9 = sbr.rel (0) target = $region5
  $region4: #{trainable_gnn_layer_forward.1} parent=0 // pred_region
    _
  $region5: #{trainable_gnn_layer_forward.1} parent=0 // pred_fallthru
    _
  // Predicated region
  $region6: #{trainable_gnn_layer_forward.1} parent=0 // pred_check
    _
  $region7: #{trainable_gnn_layer_forward.1} parent=0 // pred_check_branch
    %11 = sbr.rel (0) target = $region9
  $region8: #{trainable_gnn_layer_forward.1} parent=0 // pred_region
    _
  $region9: #{trainable_gnn_layer_forward.1} parent=0 // pred_fallthru
    _
  // Predicated region
  $region10: #{trainable_gnn_layer_forward.1} parent=0 // pred_check
    _
  $region11: #{trainable_gnn_layer_forward.1} parent=0 // pred_check_branch
    %13 = sbr.rel (0) target = $region13
  $region12: #{trainable_gnn_layer_forward.1} parent=0 // pred_region
    _
  $region13: #{trainable_gnn_layer_forward.1} parent=0 // pred_fallthru
    _
  %v14 = vld [vmem:[%s0] sm:$0xf]
  %v15 = vld [vmem:[%s0 + $0x4] sm:$0xf]
  %v16 = vld [vmem:[%s0 + $0x8] sm:$0xf]
  %v17 = vld [vmem:[%s0 + $0xc] sm:$0xf]
  %v18 = vld [vmem:[%s0 + $0x10] sm:$0xf]
  %v19 = vld [vmem:[%s0 + $0x14] sm:$0xf]
  %v20 = vld [vmem:[%s0 + $0x18] sm:$0xf]
  %v21 = vld [vmem:[%s0 + $0x1c] sm:$0xf]
  %v22 = vunpack.c.l.bf16 %v14
  %v23 = vunpack.c.l.bf16 %v15
  %v24 = vunpack.c.l.bf16 %v16
  %v25 = vunpack.c.l.bf16 %v17
  %v26 = vunpack.c.l.bf16 %v18
  %v27 = vunpack.c.l.bf16 %v19
  %v28 = vunpack.c.l.bf16 %v20
  %v29 = vunpack.c.l.bf16 %v21
  %v30 = vld [vmem:[%s1] sm:$0xff]
  %v31 = vld [vmem:[%s1 + $0x8] sm:$0xff]
  %v32 = vld [vmem:[%s1 + $0x10] sm:$0xff]
  %v33 = vld [vmem:[%s1 + $0x18] sm:$0xff]
  %v34 = vld [vmem:[%s1 + $0x20] sm:$0xff]
  %v35 = vld [vmem:[%s1 + $0x28] sm:$0xff]
  %v36 = vld [vmem:[%s1 + $0x30] sm:$0xff]
  %v37 = vld [vmem:[%s1 + $0x38] sm:$0xff]
  %v38 = vld [vmem:[%s2] sm:$0x1]
  %v40 = vperm.slane %v38, 0
  %vm42 = vcmask 523264
  %v44 = vsel %vm42, %v22, 0
  %v47 = vsel %vm42, %v23, 0
  %v50 = vsel %vm42, %v24, 0
  %v53 = vsel %vm42, %v25, 0
  %v56 = vsel %vm42, %v26, 0
  %v59 = vsel %vm42, %v27, 0
  %v62 = vsel %vm42, %v28, 0
  %v65 = vsel %vm42, %v29, 0
  %67 = vmatpush.msra.mxu0 0.0
  %68 = vmatpush.msra.mxu0 0.0
  %69 = vmatpush.msra.mxu0 0.0
  %70 = vmatpush.msra.mxu0 0.0
  %71 = vmatpush.msra.mxu0 0.0
  %72 = vmatpush.msra.mxu0 0.0
  %73 = vmatpush.msra.mxu0 0.0
  %74 = vmatpush.msra.mxu0 0.0
  %75 = vmatpush.msra.mxu0 %v37
  %76 = vmatpush.msra.mxu0 %v36
  %77 = vmatpush.msra.mxu0 %v35
  %78 = vmatpush.msra.mxu0 %v34
  %79 = vmatpush.msra.mxu0 %v33
  %80 = vmatpush.msra.mxu0 %v32
  %81 = vmatpush.msra.mxu0 %v31
  %82 = vmatpush.msra.mxu0 %v30
  %83 = vmatmul.f32.gmra.mxu0 %v44
  %v84 = vpop.f32.mrf.mxu0
  %v85 = vadd.f32 %v40, %v84
  %86 = vmatmul.f32.gmra.mxu0 %v47
  %v87 = vpop.f32.mrf.mxu0
  %v88 = vadd.f32 %v40, %v87
  %89 = vmatmul.f32.gmra.mxu0 %v50
  %v90 = vpop.f32.mrf.mxu0
  %v91 = vadd.f32 %v40, %v90
  %92 = vmatmul.f32.gmra.mxu0 %v53
  %v93 = vpop.f32.mrf.mxu0
  %v94 = vadd.f32 %v40, %v93
  %95 = vmatmul.f32.gmra.mxu0 %v56
  %v96 = vpop.f32.mrf.mxu0
  %v97 = vadd.f32 %v40, %v96
  %98 = vmatmul.f32.gmra.mxu0 %v59
  %v99 = vpop.f32.mrf.mxu0
  %v100 = vadd.f32 %v40, %v99
  %101 = vmatmul.f32.gmra.mxu0 %v62
  %v102 = vpop.f32.mrf.mxu0
  %v103 = vadd.f32 %v40, %v102
  %104 = vmatmul.f32.gmra.mxu0 %v65
  %v105 = vpop.f32.mrf.mxu0
  %v106 = vadd.f32 %v40, %v105
  %107 = vdwg.mxu0
  %108 = vst [vmem:[%s3] sm:$0xff] %v85
  %109 = vst [vmem:[%s3 + $0x8] sm:$0xff] %v88
  %110 = vst [vmem:[%s3 + $0x10] sm:$0xff] %v91
  %111 = vst [vmem:[%s3 + $0x18] sm:$0xff] %v94
  %112 = vst [vmem:[%s3 + $0x20] sm:$0xff] %v97
  %113 = vst [vmem:[%s3 + $0x28] sm:$0xff] %v100
  %114 = vst [vmem:[%s3 + $0x30] sm:$0xff] %v103
  %115 = vst [vmem:[%s3 + $0x38] sm:$0xff] %v106
  // Predicated region
  $region14: #{trainable_gnn_layer_forward.1} parent=0 // pred_check
    _
  $region15: #{trainable_gnn_layer_forward.1} parent=0 // pred_check_branch
    %117 = sbr.rel (0) target = $region17
  $region16: #{trainable_gnn_layer_forward.1} parent=0 // pred_region
    _
  $region17: #{trainable_gnn_layer_forward.1} parent=0 // pred_fallthru
    _
  // Predicated region
  $region18: #{trainable_gnn_layer_forward.1} parent=0 // pred_check
    _
  $region19: #{trainable_gnn_layer_forward.1} parent=0 // pred_check_branch
    %119 = sbr.rel (0) target = $region21
  $region20: #{trainable_gnn_layer_forward.1} parent=0 // pred_region
    _
  $region21: #{trainable_gnn_layer_forward.1} parent=0 // pred_fallthru
    _

</llo_original>
